<compile_context>
chip_gen: v7x
topology: tpu7x:2x2x1
jax: 0.10.0
libtpu: 0.0.40
codegen_flags: <defaults>
</compile_context>

<pallas_src>
import functools

import jax
import jax.numpy as jnp
from jax.experimental import pallas as pl
from jax.experimental.pallas import tpu as pltpu

H1 = 768        # BERT hidden size
H2 = 128        # classifier hidden size
NCLS = 2        # number of classes
NCLS_PAD = 128  # lane-padded width used only for the W3 matmul (MXU-friendly)


def _mlp_head_kernel(x_ref, w1_ref, b1_ref, w2_ref, b2_ref, w3_ref, b3_ref,
                     o_ref):
    # x_ref: (TB, H1) f32 -> cast to bf16 in-register (free VPU pack).
    # w1: (H1, H2) bf16   w2: (H2, H2) bf16   w3: (H2, NCLS_PAD) f32 (padded)
    # b1/b2: (1, H2) f32  b3: (1, NCLS_PAD) f32      o_ref: (TB, NCLS) f32
    x = x_ref[...].astype(jnp.bfloat16)
    h = jnp.dot(x, w1_ref[...], preferred_element_type=jnp.float32) + b1_ref[...]
    h = jnp.maximum(h, 0.0).astype(jnp.bfloat16)
    h = jnp.dot(h, w2_ref[...], preferred_element_type=jnp.float32) + b2_ref[...]
    h = jnp.maximum(h, 0.0)  # keep f32 into the tiny final layer (accuracy)
    out = jnp.dot(h, w3_ref[...], preferred_element_type=jnp.float32) + b3_ref[...]
    # Store only the real logit columns (tiny writeback, one masked vst/tile).
    o_ref[...] = out[:, :NCLS]


def _round_up(x, m):
    return ((x + m - 1) // m) * m


def _auto_block_b(B):
    """Batch-tile heuristic.

    * tiny batches: one tile of round_up(B, 8) rows (no wasted work)
    * larger batches: tiles are multiples of 256, capped at 1024 rows, and
      sized so grid_b >= 2 (keeps both v7x TensorCores busy).
    """
    b8 = _round_up(B, 8)
    if b8 <= 256:
        return b8
    half = _round_up((b8 + 1) // 2, 256)
    return min(1024, half)


@functools.partial(jax.jit, static_argnames=("block_b",))
def classifier_head(cls_emb, w1, b1, w2, b2, w3_pad, b3_pad, *, block_b=None):
    """Pallas MLP head: logits = W3 @ relu(W2 @ relu(W1 @ x + b1) + b2) + b3."""
    B = cls_emb.shape[0]
    if block_b is None:
        block_b = _auto_block_b(B)
    grid_b = pl.cdiv(B, block_b)

    full = lambda i: (0, 0)

    out = pl.pallas_call(
        _mlp_head_kernel,
        out_shape=jax.ShapeDtypeStruct((B, NCLS), jnp.float32),
        grid_spec=pltpu.PrefetchScalarGridSpec(
            num_scalar_prefetch=0,
            grid=(grid_b,),
            in_specs=[
                pl.BlockSpec((block_b, H1), lambda i: (i, 0)),   # x tile (f32)
                pl.BlockSpec((H1, H2), full),                    # W1 (bf16)
                pl.BlockSpec((1, H2), full),                     # b1 (f32)
                pl.BlockSpec((H2, H2), full),                    # W2 (bf16)
                pl.BlockSpec((1, H2), full),                     # b2 (f32)
                pl.BlockSpec((H2, NCLS_PAD), full),              # W3 padded (f32)
                pl.BlockSpec((1, NCLS_PAD), full),               # b3 padded (f32)
            ],
            out_specs=pl.BlockSpec((block_b, NCLS), lambda i: (i, 0)),
        ),
        compiler_params=pltpu.CompilerParams(
            dimension_semantics=("parallel",)),
    )(cls_emb, w1, b1, w2, b2, w3_pad, b3_pad)

    return out


def init_params(key):
    """Deterministic synthetic f32 parameters matching the nn.Sequential shapes."""
    k1, k2, k3, k4, k5, k6 = jax.random.split(key, 6)
    # torch.nn.Linear stores weight as (out, in); we keep (in, out) so the
    # kernel computes x @ W + b directly.
    w1 = jax.random.normal(k1, (H1, H2), jnp.float32) * (1.0 / jnp.sqrt(H1))
    b1 = jax.random.normal(k2, (1, H2), jnp.float32) * 0.01
    w2 = jax.random.normal(k3, (H2, H2), jnp.float32) * (1.0 / jnp.sqrt(H2))
    b2 = jax.random.normal(k4, (1, H2), jnp.float32) * 0.01
    w3 = jax.random.normal(k5, (H2, NCLS), jnp.float32) * (1.0 / jnp.sqrt(H2))
    b3 = jax.random.normal(k6, (1, NCLS), jnp.float32) * 0.01
    return w1, b1, w2, b2, w3, b3


def prepare_kernel_params(w1, b1, w2, b2, w3, b3):
    """One-time (outside the per-call jit) weight cast + W3/b3 lane padding."""
    w3_pad = jnp.zeros((H2, NCLS_PAD), jnp.float32).at[:, :NCLS].set(w3)
    b3_pad = jnp.zeros((1, NCLS_PAD), jnp.float32).at[:, :NCLS].set(b3)
    # W1/W2 bf16 (big matmuls); W3/b3 stay f32 for logit accuracy.
    return (w1.astype(jnp.bfloat16), b1,
            w2.astype(jnp.bfloat16), b2,
            w3_pad, b3_pad)


def reference_head(cls_emb, w1, b1, w2, b2, w3, b3):
    h = jnp.maximum(cls_emb @ w1 + b1, 0.0)
    h = jnp.maximum(h @ w2 + b2, 0.0)
    return h @ w3 + b3


if __name__ == "__main__":
    key = jax.random.PRNGKey(0)
    k_x, k_p = jax.random.split(key)

    B = 8  # small demo batch -> auto block_b = 8, single grid step
    # Pooled CLS embedding (stand-in for bert(...).pooler_output).
    cls_emb = jax.random.normal(k_x, (B, H1), jnp.float32)

    params_f32 = init_params(k_p)
    kernel_params = prepare_kernel_params(*params_f32)
    kernel_params = jax.tree_util.tree_map(jax.block_until_ready, kernel_params)

    logits = classifier_head(cls_emb, *kernel_params)
    logits = jax.block_until_ready(logits)

    ref = reference_head(cls_emb, *params_f32)
    assert logits.shape == (B, NCLS), logits.shape
    # bf16 layers 1-2 vs f32 reference -> loose-ish tolerance; layer 3 is f32.
    assert jnp.allclose(logits, ref, atol=5e-2, rtol=5e-2), "mismatch vs reference"

    print("KERNEL_OK")
</pallas_src>

<mosaic_0001>
module attributes {stable_mosaic.version = 11 : i64} {
  func.func @_mlp_head_kernel(%arg0: i32, %arg1: memref<8x768xf32, #tpu.memory_space<vmem>>, %arg2: memref<768x128xbf16, #tpu.memory_space<vmem>>, %arg3: memref<1x128xf32, #tpu.memory_space<vmem>>, %arg4: memref<128x128xbf16, #tpu.memory_space<vmem>>, %arg5: memref<1x128xf32, #tpu.memory_space<vmem>>, %arg6: memref<128x128xf32, #tpu.memory_space<vmem>>, %arg7: memref<1x128xf32, #tpu.memory_space<vmem>>, %arg8: memref<8x2xf32, #tpu.memory_space<vmem>>) attributes {dimension_semantics = [#tpu.dimension_semantics<parallel>], iteration_bounds = array<i64: 1>, scalar_prefetch = 0 : i64, scratch_operands = 0 : i64, tpu.core_type = #tpu.core_type<tc>, window_params = [{transform_indices = @transform_0, window_bounds = array<i64: 8, 768>}, {pipeline_mode = #tpu.pipeline_mode<synchronous>, transform_indices = @transform_1, window_bounds = array<i64: 768, 128>}, {pipeline_mode = #tpu.pipeline_mode<synchronous>, transform_indices = @transform_2, window_bounds = array<i64: 1, 128>}, {pipeline_mode = #tpu.pipeline_mode<synchronous>, transform_indices = @transform_3, window_bounds = array<i64: 128, 128>}, {pipeline_mode = #tpu.pipeline_mode<synchronous>, transform_indices = @transform_4, window_bounds = array<i64: 1, 128>}, {pipeline_mode = #tpu.pipeline_mode<synchronous>, transform_indices = @transform_5, window_bounds = array<i64: 128, 128>}, {pipeline_mode = #tpu.pipeline_mode<synchronous>, transform_indices = @transform_6, window_bounds = array<i64: 1, 128>}, {transform_indices = @transform_7, window_bounds = array<i64: 8, 2>}]} {
    %c0 = arith.constant 0 : index
    %c0_0 = arith.constant 0 : index
    %0 = vector.load %arg1[%c0, %c0_0] : memref<8x768xf32, #tpu.memory_space<vmem>>, vector<8x768xf32>
    %1 = arith.truncf %0 : vector<8x768xf32> to vector<8x768xbf16>
    %c0_1 = arith.constant 0 : index
    %c0_2 = arith.constant 0 : index
    %2 = vector.load %arg2[%c0_1, %c0_2] : memref<768x128xbf16, #tpu.memory_space<vmem>>, vector<768x128xbf16>
    %cst = arith.constant dense<0.000000e+00> : vector<8x128xf32>
    %3 = tpu.matmul %1, %2, %cst {dimension_numbers = #tpu.dot_dimension_numbers<[1], [0], [0], [1], [0, 0, 1, 1], [], []>} : vector<8x768xbf16>, vector<768x128xbf16>, vector<8x128xf32> -> vector<8x128xf32>
    %c0_3 = arith.constant 0 : index
    %c0_4 = arith.constant 0 : index
    %4 = vector.load %arg3[%c0_3, %c0_4] : memref<1x128xf32, #tpu.memory_space<vmem>>, vector<1x128xf32>
    %5 = vector.broadcast %4 : vector<1x128xf32> to vector<8x128xf32>
    %6 = arith.addf %3, %5 : vector<8x128xf32>
    %cst_5 = arith.constant 0.000000e+00 : f32
    %7 = vector.broadcast %cst_5 : f32 to vector<8x128xf32>
    %8 = arith.maximumf %6, %7 : vector<8x128xf32>
    %9 = arith.truncf %8 : vector<8x128xf32> to vector<8x128xbf16>
    %c0_6 = arith.constant 0 : index
    %c0_7 = arith.constant 0 : index
    %10 = vector.load %arg4[%c0_6, %c0_7] : memref<128x128xbf16, #tpu.memory_space<vmem>>, vector<128x128xbf16>
    %cst_8 = arith.constant dense<0.000000e+00> : vector<8x128xf32>
    %11 = tpu.matmul %9, %10, %cst_8 {dimension_numbers = #tpu.dot_dimension_numbers<[1], [0], [0], [1], [0, 0, 1, 1], [], []>} : vector<8x128xbf16>, vector<128x128xbf16>, vector<8x128xf32> -> vector<8x128xf32>
    %c0_9 = arith.constant 0 : index
    %c0_10 = arith.constant 0 : index
    %12 = vector.load %arg5[%c0_9, %c0_10] : memref<1x128xf32, #tpu.memory_space<vmem>>, vector<1x128xf32>
    %13 = vector.broadcast %12 : vector<1x128xf32> to vector<8x128xf32>
    %14 = arith.addf %11, %13 : vector<8x128xf32>
    %cst_11 = arith.constant 0.000000e+00 : f32
    %15 = vector.broadcast %cst_11 : f32 to vector<8x128xf32>
    %16 = arith.maximumf %14, %15 : vector<8x128xf32>
    %c0_12 = arith.constant 0 : index
    %c0_13 = arith.constant 0 : index
    %17 = vector.load %arg6[%c0_12, %c0_13] : memref<128x128xf32, #tpu.memory_space<vmem>>, vector<128x128xf32>
    %cst_14 = arith.constant dense<0.000000e+00> : vector<8x128xf32>
    %18 = tpu.matmul %16, %17, %cst_14 {dimension_numbers = #tpu.dot_dimension_numbers<[1], [0], [0], [1], [0, 0, 1, 1], [], []>} : vector<8x128xf32>, vector<128x128xf32>, vector<8x128xf32> -> vector<8x128xf32>
    %c0_15 = arith.constant 0 : index
    %c0_16 = arith.constant 0 : index
    %19 = vector.load %arg7[%c0_15, %c0_16] : memref<1x128xf32, #tpu.memory_space<vmem>>, vector<1x128xf32>
    %20 = vector.broadcast %19 : vector<1x128xf32> to vector<8x128xf32>
    %21 = arith.addf %18, %20 : vector<8x128xf32>
    %22 = vector.extract_strided_slice %21 {offsets = [0, 0], sizes = [8, 2], strides = [1, 1]} : vector<8x128xf32> to vector<8x2xf32>
    %c0_17 = arith.constant 0 : index
    %c0_18 = arith.constant 0 : index
    %23 = vector.load %arg8[%c0_17, %c0_18] : memref<8x2xf32, #tpu.memory_space<vmem>>, vector<8x2xf32>
    tpu.vector_store %arg8[%c0_17, %c0_18], %22 {strides = array<i32>} : memref<8x2xf32, #tpu.memory_space<vmem>>, vector<8x2xf32>,
    return
  }
  func.func @transform_0(%arg0: i32) -> (i32, i32) {
    %c0_i32 = arith.constant 0 : i32
    %c0_i32_0 = arith.constant 0 : i32
    return %arg0, %c0_i32 : i32, i32
  }
  func.func @transform_1(%arg0: i32) -> (i32, i32) {
    %c0_i32 = arith.constant 0 : i32
    %c0_i32_0 = arith.constant 0 : i32
    %c0_i32_1 = arith.constant 0 : i32
    return %c0_i32, %c0_i32_0 : i32, i32
  }
  func.func @transform_2(%arg0: i32) -> (i32, i32) {
    %c0_i32 = arith.constant 0 : i32
    %c0_i32_0 = arith.constant 0 : i32
    %c0_i32_1 = arith.constant 0 : i32
    return %c0_i32, %c0_i32_0 : i32, i32
  }
  func.func @transform_3(%arg0: i32) -> (i32, i32) {
    %c0_i32 = arith.constant 0 : i32
    %c0_i32_0 = arith.constant 0 : i32
    %c0_i32_1 = arith.constant 0 : i32
    return %c0_i32, %c0_i32_0 : i32, i32
  }
  func.func @transform_4(%arg0: i32) -> (i32, i32) {
    %c0_i32 = arith.constant 0 : i32
    %c0_i32_0 = arith.constant 0 : i32
    %c0_i32_1 = arith.constant 0 : i32
    return %c0_i32, %c0_i32_0 : i32, i32
  }
  func.func @transform_5(%arg0: i32) -> (i32, i32) {
    %c0_i32 = arith.constant 0 : i32
    %c0_i32_0 = arith.constant 0 : i32
    %c0_i32_1 = arith.constant 0 : i32
    return %c0_i32, %c0_i32_0 : i32, i32
  }
  func.func @transform_6(%arg0: i32) -> (i32, i32) {
    %c0_i32 = arith.constant 0 : i32
    %c0_i32_0 = arith.constant 0 : i32
    %c0_i32_1 = arith.constant 0 : i32
    return %c0_i32, %c0_i32_0 : i32, i32
  }
  func.func @transform_7(%arg0: i32) -> (i32, i32) {
    %c0_i32 = arith.constant 0 : i32
    %c0_i32_0 = arith.constant 0 : i32
    return %arg0, %c0_i32 : i32, i32
  }
}

</mosaic_0001>

<llo_original>
// kernel: classifier_head.1
$region0: #{classifier_head.1}
  #allocation0 [shape = 'u32[]', space=smem, size = 0x4, offset = 0x4, fixed_abs, tag = 'smem constant byte address 0x4 - core index']
  #allocation1 [shape = 'u32[144,128]{1,0:T(1,128)}', space=vmem, size = 0x12000, scoped, tag = 'internal scratch']
  %s0 = inlined_call_operand.hbm [shape: f32[8,768], index: 0, kind: input, shape index: {}]
  %s1 = inlined_call_operand.hbm [shape: bf16[768,128], index: 1, kind: input, shape index: {}]
  %s2 = inlined_call_operand.vmem [shape: f32[1,128], index: 2, kind: input, shape index: {}]
  %s3 = inlined_call_operand.hbm [shape: bf16[128,128], index: 3, kind: input, shape index: {}]
  %s4 = inlined_call_operand.vmem [shape: f32[1,128], index: 4, kind: input, shape index: {}]
  %s5 = inlined_call_operand.hbm [shape: f32[128,128], index: 5, kind: input, shape index: {}]
  %s6 = inlined_call_operand.vmem [shape: f32[1,128], index: 6, kind: input, shape index: {}]
  %s7 = inlined_call_operand.vmem [shape: f32[8,2], index: 7, kind: output, shape index: {}]
  %s8 = sld [smem:[#allocation0]]
  $region54: #{classifier_head.1} parent=0
    _
  %s10 = ssub.s32 1, %s8
  %s11 = scalar_select 0, %s10, %s8
  $region1: #{classifier_head.1} parent=0
    #allocation2 [shape = 'u8[24576]{0}', space=vmem, size = 0x6000, scoped, tag = 'input window, operand 0, single buffered']
    #allocation3 [shape = 's32[1]{0}', space=sflag, size = 0x4, scoped, tag = 'scoped memory for classifier_head.1']
    #allocation4 [shape = 'u8[196608]{0}', space=vmem, size = 0x30000, scoped, tag = 'input window, operand 1, single buffered']
    #allocation5 [shape = 's32[1]{0}', space=sflag, size = 0x4, scoped, tag = 'scoped memory for classifier_head.1']
    #allocation6 [shape = 'u8[32768]{0}', space=vmem, size = 0x8000, scoped, tag = 'input window, operand 3, single buffered']
    #allocation7 [shape = 'u8[65536]{0}', space=vmem, size = 0x10000, scoped, tag = 'input window, operand 5, single buffered']
    #allocation8 [shape = 's32[1]{0}', space=sflag, size = 0x4, scoped, tag = 'scoped memory for classifier_head.1']
    %12 = vsyncpa [#allocation3], 0
    %13 = vsyncpa [#allocation5], 0
    %14 = vsyncpa [#allocation8], 0
    // Predicated region
    $region2: #{classifier_head.1} parent=1 // pred_check
      _
    $region3: #{classifier_head.1} parent=1 // pred_check_branch
      %16 = sbr.rel (0) target = $region5
    $region4: #{classifier_head.1} parent=1 // pred_region
      %s18 = ssub.s32 768, 768
      %19 = vsyncadd [#allocation3], %s18
      %s21 = sshll.u32 [#allocation2], 4
      %s22 = int_to_ptr.vmem [resolvable:$true] %s21
      %24 = dma.hbm_to_vmem [thread:$0]  %s0, 768, %s22, [#allocation3]
    $region5: #{classifier_head.1} parent=1 // pred_fallthru
      _
    // Predicated region
    $region6: #{classifier_head.1} parent=1 // pred_check
      _
    $region7: #{classifier_head.1} parent=1 // pred_check_branch
      %26 = sbr.rel (0) target = $region9
    $region8: #{classifier_head.1} parent=1 // pred_region
      %s28 = ssub.s32 6144, 6144
      %29 = vsyncadd [#allocation5], %s28
      %s30 = sshll.u32 [#allocation4], 4
      %s31 = int_to_ptr.vmem [resolvable:$true] %s30
      %36 = dma.hbm_to_vmem [thread:$0]  %s1, 6144, %s31, [#allocation5], 64, 64, 4
    $region9: #{classifier_head.1} parent=1 // pred_fallthru
      _
    // Predicated region
    $region10: #{classifier_head.1} parent=1 // pred_check
      _
    $region11: #{classifier_head.1} parent=1 // pred_check_branch
      %38 = sbr.rel (0) target = $region13
    $region12: #{classifier_head.1} parent=1 // pred_region
      _
    $region13: #{classifier_head.1} parent=1 // pred_fallthru
      _
    // Predicated region
    $region14: #{classifier_head.1} parent=1 // pred_check
      _
    $region15: #{classifier_head.1} parent=1 // pred_check_branch
      %40 = sbr.rel (0) target = $region17
    $region16: #{classifier_head.1} parent=1 // pred_region
      %s42 = ssub.s32 1024, 1024
      %43 = vsyncadd [#allocation5], %s42
      %s44 = sshll.u32 [#allocation6], 4
      %s45 = int_to_ptr.vmem [resolvable:$true] %s44
      %50 = dma.hbm_to_vmem [thread:$0]  %s3, 1024, %s45, [#allocation5], 64, 64, 4
    $region17: #{classifier_head.1} parent=1 // pred_fallthru
      _
    // Predicated region
    $region18: #{classifier_head.1} parent=1 // pred_check
      _
    $region19: #{classifier_head.1} parent=1 // pred_check_branch
      %52 = sbr.rel (0) target = $region21
    $region20: #{classifier_head.1} parent=1 // pred_region
      _
    $region21: #{classifier_head.1} parent=1 // pred_fallthru
      _
    // Predicated region
    $region22: #{classifier_head.1} parent=1 // pred_check
      _
    $region23: #{classifier_head.1} parent=1 // pred_check_branch
      %54 = sbr.rel (0) target = $region25
    $region24: #{classifier_head.1} parent=1 // pred_region
      %s56 = ssub.s32 2048, 2048
      %57 = vsyncadd [#allocation8], %s56
      %s58 = sshll.u32 [#allocation7], 4
      %s59 = int_to_ptr.vmem [resolvable:$true] %s58
      %64 = dma.hbm_to_vmem [thread:$0]  %s5, 2048, %s59, [#allocation8], 128, 128, 8
    $region25: #{classifier_head.1} parent=1 // pred_fallthru
      _
    // Predicated region
    $region26: #{classifier_head.1} parent=1 // pred_check
      _
    $region27: #{classifier_head.1} parent=1 // pred_check_branch
      %66 = sbr.rel (0) target = $region29
    $region28: #{classifier_head.1} parent=1 // pred_region
      _
    $region29: #{classifier_head.1} parent=1 // pred_fallthru
      _
    // Predicated region
    $region30: #{classifier_head.1} parent=1 // pred_check
      _
    $region31: #{classifier_head.1} parent=1 // pred_check_branch
      %68 = sbr.rel (0) target = $region33
    $region32: #{classifier_head.1} parent=1 // pred_region
      %69 = dma.done [#allocation3], 768
    $region33: #{classifier_head.1} parent=1 // pred_fallthru
      _
    // Predicated region
    $region34: #{classifier_head.1} parent=1 // pred_check
      _
    $region35: #{classifier_head.1} parent=1 // pred_check_branch
      %71 = sbr.rel (0) target = $region37
    $region36: #{classifier_head.1} parent=1 // pred_region
      %72 = dma.done [#allocation5], 6144
    $region37: #{classifier_head.1} parent=1 // pred_fallthru
      _
    // Predicated region
    $region38: #{classifier_head.1} parent=1 // pred_check
      _
    $region39: #{classifier_head.1} parent=1 // pred_check_branch
      %74 = sbr.rel (0) target = $region41
    $region40: #{classifier_head.1} parent=1 // pred_region
      %75 = dma.done [#allocation5], 1024
    $region41: #{classifier_head.1} parent=1 // pred_fallthru
      _
    // Predicated region
    $region42: #{classifier_head.1} parent=1 // pred_check
      _
    $region43: #{classifier_head.1} parent=1 // pred_check_branch
      %77 = sbr.rel (0) target = $region45
    $region44: #{classifier_head.1} parent=1 // pred_region
      %78 = dma.done [#allocation8], 2048
    $region45: #{classifier_head.1} parent=1 // pred_fallthru
      _
    %v80 = vld [vmem:[#allocation2] sm:$0xff]
    %v81 = vld [vmem:[#allocation2 + $0x8] sm:$0xff]
    %v82 = vld [vmem:[#allocation2 + $0x10] sm:$0xff]
    %v83 = vld [vmem:[#allocation2 + $0x18] sm:$0xff]
    %v84 = vld [vmem:[#allocation2 + $0x20] sm:$0xff]
    %v85 = vld [vmem:[#allocation2 + $0x28] sm:$0xff]
    %v86 = vpack.c.bf16 %v80, %v80
    %v87 = vpack.c.bf16 %v81, %v81
    %v88 = vpack.c.bf16 %v82, %v82
    %v89 = vpack.c.bf16 %v83, %v83
    %v90 = vpack.c.bf16 %v84, %v84
    %v91 = vpack.c.bf16 %v85, %v85
    %v92 = vld [vmem:[#allocation4] sm:$0xf]
    %v93 = vld [vmem:[#allocation4 + $0x4] sm:$0xf]
    %v94 = vld [vmem:[#allocation4 + $0x8] sm:$0xf]
    %v95 = vld [vmem:[#allocation4 + $0xc] sm:$0xf]
    %v96 = vld [vmem:[#allocation4 + $0x10] sm:$0xf]
    %v97 = vld [vmem:[#allocation4 + $0x14] sm:$0xf]
    %v98 = vld [vmem:[#allocation4 + $0x18] sm:$0xf]
    %v99 = vld [vmem:[#allocation4 + $0x1c] sm:$0xf]
    %v100 = vld [vmem:[#allocation4 + $0x20] sm:$0xf]
    %v101 = vld [vmem:[#allocation4 + $0x24] sm:$0xf]
    %v102 = vld [vmem:[#allocation4 + $0x28] sm:$0xf]
    %v103 = vld [vmem:[#allocation4 + $0x2c] sm:$0xf]
    %v104 = vld [vmem:[#allocation4 + $0x30] sm:$0xf]
    %v105 = vld [vmem:[#allocation4 + $0x34] sm:$0xf]
    %v106 = vld [vmem:[#allocation4 + $0x38] sm:$0xf]
    %v107 = vld [vmem:[#allocation4 + $0x3c] sm:$0xf]
    %v108 = vld [vmem:[#allocation4 + $0x40] sm:$0xf]
    %v109 = vld [vmem:[#allocation4 + $0x44] sm:$0xf]
    %v110 = vld [vmem:[#allocation4 + $0x48] sm:$0xf]
    %v111 = vld [vmem:[#allocation4 + $0x4c] sm:$0xf]
    %v112 = vld [vmem:[#allocation4 + $0x50] sm:$0xf]
    %v113 = vld [vmem:[#allocation4 + $0x54] sm:$0xf]
    %v114 = vld [vmem:[#allocation4 + $0x58] sm:$0xf]
    %v115 = vld [vmem:[#allocation4 + $0x5c] sm:$0xf]
    %v116 = vld [vmem:[#allocation4 + $0x60] sm:$0xf]
    %v117 = vld [vmem:[#allocation4 + $0x64] sm:$0xf]
    %v118 = vld [vmem:[#allocation4 + $0x68] sm:$0xf]
    %v119 = vld [vmem:[#allocation4 + $0x6c] sm:$0xf]
    %v120 = vld [vmem:[#allocation4 + $0x70] sm:$0xf]
    %v121 = vld [vmem:[#allocation4 + $0x74] sm:$0xf]
    %v122 = vld [vmem:[#allocation4 + $0x78] sm:$0xf]
    %v123 = vld [vmem:[#allocation4 + $0x7c] sm:$0xf]
    %v124 = vld [vmem:[#allocation4 + $0x80] sm:$0xf]
    %v125 = vld [vmem:[#allocation4 + $0x84] sm:$0xf]
    %v126 = vld [vmem:[#allocation4 + $0x88] sm:$0xf]
    %v127 = vld [vmem:[#allocation4 + $0x8c] sm:$0xf]
    %v128 = vld [vmem:[#allocation4 + $0x90] sm:$0xf]
    %v129 = vld [vmem:[#allocation4 + $0x94] sm:$0xf]
    %v130 = vld [vmem:[#allocation4 + $0x98] sm:$0xf]
    %v131 = vld [vmem:[#allocation4 + $0x9c] sm:$0xf]
    %v132 = vld [vmem:[#allocation4 + $0xa0] sm:$0xf]
    %v133 = vld [vmem:[#allocation4 + $0xa4] sm:$0xf]
    %v134 = vld [vmem:[#allocation4 + $0xa8] sm:$0xf]
    %v135 = vld [vmem:[#allocation4 + $0xac] sm:$0xf]
    %v136 = vld [vmem:[#allocation4 + $0xb0] sm:$0xf]
    %v137 = vld [vmem:[#allocation4 + $0xb4] sm:$0xf]
    %v138 = vld [vmem:[#allocation4 + $0xb8] sm:$0xf]
    %v139 = vld [vmem:[#allocation4 + $0xbc] sm:$0xf]
    %v140 = vld [vmem:[#allocation4 + $0xc0] sm:$0xf]
    %v141 = vld [vmem:[#allocation4 + $0xc4] sm:$0xf]
    %v142 = vld [vmem:[#allocation4 + $0xc8] sm:$0xf]
    %v143 = vld [vmem:[#allocation4 + $0xcc] sm:$0xf]
    %v144 = vld [vmem:[#allocation4 + $0xd0] sm:$0xf]
    %v145 = vld [vmem:[#allocation4 + $0xd4] sm:$0xf]
    %v146 = vld [vmem:[#allocation4 + $0xd8] sm:$0xf]
    %v147 = vld [vmem:[#allocation4 + $0xdc] sm:$0xf]
    %v148 = vld [vmem:[#allocation4 + $0xe0] sm:$0xf]
    %v149 = vld [vmem:[#allocation4 + $0xe4] sm:$0xf]
    %v150 = vld [vmem:[#allocation4 + $0xe8] sm:$0xf]
    %v151 = vld [vmem:[#allocation4 + $0xec] sm:$0xf]
    %v152 = vld [vmem:[#allocation4 + $0xf0] sm:$0xf]
    %v153 = vld [vmem:[#allocation4 + $0xf4] sm:$0xf]
    %v154 = vld [vmem:[#allocation4 + $0xf8] sm:$0xf]
    %v155 = vld [vmem:[#allocation4 + $0xfc] sm:$0xf]
    %v156 = vld [vmem:[#allocation4 + $0x100] sm:$0xf]
    %v157 = vld [vmem:[#allocation4 + $0x104] sm:$0xf]
    %v158 = vld [vmem:[#allocation4 + $0x108] sm:$0xf]
    %v159 = vld [vmem:[#allocation4 + $0x10c] sm:$0xf]
    %v160 = vld [vmem:[#allocation4 + $0x110] sm:$0xf]
    %v161 = vld [vmem:[#allocation4 + $0x114] sm:$0xf]
    %v162 = vld [vmem:[#allocation4 + $0x118] sm:$0xf]
    %v163 = vld [vmem:[#allocation4 + $0x11c] sm:$0xf]
    %v164 = vld [vmem:[#allocation4 + $0x120] sm:$0xf]
    %v165 = vld [vmem:[#allocation4 + $0x124] sm:$0xf]
    %v166 = vld [vmem:[#allocation4 + $0x128] sm:$0xf]
    %v167 = vld [vmem:[#allocation4 + $0x12c] sm:$0xf]
    %v168 = vld [vmem:[#allocation4 + $0x130] sm:$0xf]
    %v169 = vld [vmem:[#allocation4 + $0x134] sm:$0xf]
    %v170 = vld [vmem:[#allocation4 + $0x138] sm:$0xf]
    %v171 = vld [vmem:[#allocation4 + $0x13c] sm:$0xf]
    %v172 = vld [vmem:[#allocation4 + $0x140] sm:$0xf]
    %v173 = vld [vmem:[#allocation4 + $0x144] sm:$0xf]
    %v174 = vld [vmem:[#allocation4 + $0x148] sm:$0xf]
    %v175 = vld [vmem:[#allocation4 + $0x14c] sm:$0xf]
    %v176 = vld [vmem:[#allocation4 + $0x150] sm:$0xf]
    %v177 = vld [vmem:[#allocation4 + $0x154] sm:$0xf]
    %v178 = vld [vmem:[#allocation4 + $0x158] sm:$0xf]
    %v179 = vld [vmem:[#allocation4 + $0x15c] sm:$0xf]
    %v180 = vld [vmem:[#allocation4 + $0x160] sm:$0xf]
    %v181 = vld [vmem:[#allocation4 + $0x164] sm:$0xf]
    %v182 = vld [vmem:[#allocation4 + $0x168] sm:$0xf]
    %v183 = vld [vmem:[#allocation4 + $0x16c] sm:$0xf]
    %v184 = vld [vmem:[#allocation4 + $0x170] sm:$0xf]
    %v185 = vld [vmem:[#allocation4 + $0x174] sm:$0xf]
    %v186 = vld [vmem:[#allocation4 + $0x178] sm:$0xf]
    %v187 = vld [vmem:[#allocation4 + $0x17c] sm:$0xf]
    %v188 = vld [vmem:[%s2] sm:$0x1]
    %v190 = vlaneseq
    %v191 = vshrl.u32 %v190, 7
    %v192 = vsub.s32 0, %v191
    %v193 = vrot.slane %v188, %v192
    %v291 = vunpack.c.l.b16 %v92
    %v292 = vunpack.c.l.b16 %v93
    %v293 = vunpack.c.l.b16 %v94
    %v294 = vunpack.c.l.b16 %v95
    %v295 = vunpack.c.l.b16 %v96
    %v296 = vunpack.c.l.b16 %v97
    %v297 = vunpack.c.l.b16 %v98
    %v298 = vunpack.c.l.b16 %v99
    %v299 = vunpack.c.l.b16 %v100
    %v300 = vunpack.c.l.b16 %v101
    %v301 = vunpack.c.l.b16 %v102
    %v302 = vunpack.c.l.b16 %v103
    %v303 = vunpack.c.l.b16 %v104
    %v304 = vunpack.c.l.b16 %v105
    %v305 = vunpack.c.l.b16 %v106
    %v306 = vunpack.c.l.b16 %v107
    %v307 = vunpack.c.l.b16 %v108
    %v308 = vunpack.c.l.b16 %v109
    %v309 = vunpack.c.l.b16 %v110
    %v310 = vunpack.c.l.b16 %v111
    %v311 = vunpack.c.l.b16 %v112
    %v312 = vunpack.c.l.b16 %v113
    %v313 = vunpack.c.l.b16 %v114
    %v314 = vunpack.c.l.b16 %v115
    %v315 = vunpack.c.l.b16 %v116
    %v316 = vunpack.c.l.b16 %v117
    %v317 = vunpack.c.l.b16 %v118
    %v318 = vunpack.c.l.b16 %v119
    %v319 = vunpack.c.l.b16 %v120
    %v320 = vunpack.c.l.b16 %v121
    %v321 = vunpack.c.l.b16 %v122
    %v322 = vunpack.c.l.b16 %v123
    %v323 = vunpack.c.l.b16 %v124
    %v324 = vunpack.c.l.b16 %v125
    %v325 = vunpack.c.l.b16 %v126
    %v326 = vunpack.c.l.b16 %v127
    %v327 = vunpack.c.l.b16 %v128
    %v328 = vunpack.c.l.b16 %v129
    %v329 = vunpack.c.l.b16 %v130
    %v330 = vunpack.c.l.b16 %v131
    %v331 = vunpack.c.l.b16 %v132
    %v332 = vunpack.c.l.b16 %v133
    %v333 = vunpack.c.l.b16 %v134
    %v334 = vunpack.c.l.b16 %v135
    %v335 = vunpack.c.l.b16 %v136
    %v336 = vunpack.c.l.b16 %v137
    %v337 = vunpack.c.l.b16 %v138
    %v338 = vunpack.c.l.b16 %v139
    %v339 = vunpack.c.l.b16 %v140
    %v340 = vunpack.c.l.b16 %v141
    %v341 = vunpack.c.l.b16 %v142
    %v342 = vunpack.c.l.b16 %v143
    %v343 = vunpack.c.l.b16 %v144
    %v344 = vunpack.c.l.b16 %v145
    %v345 = vunpack.c.l.b16 %v146
    %v346 = vunpack.c.l.b16 %v147
    %v347 = vunpack.c.l.b16 %v148
    %v348 = vunpack.c.l.b16 %v149
    %v349 = vunpack.c.l.b16 %v150
    %v350 = vunpack.c.l.b16 %v151
    %v351 = vunpack.c.l.b16 %v152
    %v352 = vunpack.c.l.b16 %v153
    %v353 = vunpack.c.l.b16 %v154
    %v354 = vunpack.c.l.b16 %v155
    %v355 = vunpack.c.l.b16 %v156
    %v356 = vunpack.c.l.b16 %v157
    %v357 = vunpack.c.l.b16 %v158
    %v358 = vunpack.c.l.b16 %v159
    %v359 = vunpack.c.l.b16 %v160
    %v360 = vunpack.c.l.b16 %v161
    %v361 = vunpack.c.l.b16 %v162
    %v362 = vunpack.c.l.b16 %v163
    %v363 = vunpack.c.l.b16 %v164
    %v364 = vunpack.c.l.b16 %v165
    %v365 = vunpack.c.l.b16 %v166
    %v366 = vunpack.c.l.b16 %v167
    %v367 = vunpack.c.l.b16 %v168
    %v368 = vunpack.c.l.b16 %v169
    %v369 = vunpack.c.l.b16 %v170
    %v370 = vunpack.c.l.b16 %v171
    %v371 = vunpack.c.l.b16 %v172
    %v372 = vunpack.c.l.b16 %v173
    %v373 = vunpack.c.l.b16 %v174
    %v374 = vunpack.c.l.b16 %v175
    %v375 = vunpack.c.l.b16 %v176
    %v376 = vunpack.c.l.b16 %v177
    %v377 = vunpack.c.l.b16 %v178
    %v378 = vunpack.c.l.b16 %v179
    %v379 = vunpack.c.l.b16 %v180
    %v380 = vunpack.c.l.b16 %v181
    %v381 = vunpack.c.l.b16 %v182
    %v382 = vunpack.c.l.b16 %v183
    %v383 = vunpack.c.l.b16 %v184
    %v384 = vunpack.c.l.b16 %v185
    %v385 = vunpack.c.l.b16 %v186
    %v386 = vunpack.c.l.b16 %v187
    %v387 = vpack.c.b16 %v292, %v291
    %v388 = vpack.c.b16 %v294, %v293
    %v389 = vpack.c.b16 %v296, %v295
    %v390 = vpack.c.b16 %v298, %v297
    %v391 = vpack.c.b16 %v300, %v299
    %v392 = vpack.c.b16 %v302, %v301
    %v393 = vpack.c.b16 %v304, %v303
    %v394 = vpack.c.b16 %v306, %v305
    %v395 = vpack.c.b16 %v308, %v307
    %v396 = vpack.c.b16 %v310, %v309
    %v397 = vpack.c.b16 %v312, %v311
    %v398 = vpack.c.b16 %v314, %v313
    %v399 = vpack.c.b16 %v316, %v315
    %v400 = vpack.c.b16 %v318, %v317
    %v401 = vpack.c.b16 %v320, %v319
    %v402 = vpack.c.b16 %v322, %v321
    %v403 = vpack.c.b16 %v324, %v323
    %v404 = vpack.c.b16 %v326, %v325
    %v405 = vpack.c.b16 %v328, %v327
    %v406 = vpack.c.b16 %v330, %v329
    %v407 = vpack.c.b16 %v332, %v331
    %v408 = vpack.c.b16 %v334, %v333
    %v409 = vpack.c.b16 %v336, %v335
    %v410 = vpack.c.b16 %v338, %v337
    %v411 = vpack.c.b16 %v340, %v339
    %v412 = vpack.c.b16 %v342, %v341
    %v413 = vpack.c.b16 %v344, %v343
    %v414 = vpack.c.b16 %v346, %v345
    %v415 = vpack.c.b16 %v348, %v347
    %v416 = vpack.c.b16 %v350, %v349
    %v417 = vpack.c.b16 %v352, %v351
    %v418 = vpack.c.b16 %v354, %v353
    %v419 = vpack.c.b16 %v356, %v355
    %v420 = vpack.c.b16 %v358, %v357
    %v421 = vpack.c.b16 %v360, %v359
    %v422 = vpack.c.b16 %v362, %v361
    %v423 = vpack.c.b16 %v364, %v363
    %v424 = vpack.c.b16 %v366, %v365
    %v425 = vpack.c.b16 %v368, %v367
    %v426 = vpack.c.b16 %v370, %v369
    %v427 = vpack.c.b16 %v372, %v371
    %v428 = vpack.c.b16 %v374, %v373
    %v429 = vpack.c.b16 %v376, %v375
    %v430 = vpack.c.b16 %v378, %v377
    %v431 = vpack.c.b16 %v380, %v379
    %v432 = vpack.c.b16 %v382, %v381
    %v433 = vpack.c.b16 %v384, %v383
    %v434 = vpack.c.b16 %v386, %v385
    %483 = vmatprep.subr.bf16.mxu0 0
    %484 = vmatpush1.bf16.msra.mxu0 %v387
    %485 = vmatprep.subr.bf16.mxu0 0
    %486 = vmatpush1.bf16.msra.mxu0 %v388
    %487 = vmatprep.subr.bf16.mxu0 0
    %488 = vmatpush1.bf16.msra.mxu0 %v389
    %489 = vmatprep.subr.bf16.mxu0 0
    %490 = vmatpush1.bf16.msra.mxu0 %v390
    %491 = vmatprep.subr.bf16.mxu0 0
    %492 = vmatpush1.bf16.msra.mxu0 %v391
    %493 = vmatprep.subr.bf16.mxu0 0
    %494 = vmatpush1.bf16.msra.mxu0 %v392
    %495 = vmatprep.subr.bf16.mxu0 0
    %496 = vmatpush1.bf16.msra.mxu0 %v393
    %497 = vmatprep.subr.bf16.mxu0 0
    %498 = vmatpush1.bf16.msra.mxu0 %v394
    %499 = vmatprep.subr.bf16.mxu0 0
    %500 = vmatpush1.bf16.msra.mxu0 %v395
    %501 = vmatprep.subr.bf16.mxu0 0
    %502 = vmatpush1.bf16.msra.mxu0 %v396
    %503 = vmatprep.subr.bf16.mxu0 0
    %504 = vmatpush1.bf16.msra.mxu0 %v397
    %505 = vmatprep.subr.bf16.mxu0 0
    %506 = vmatpush1.bf16.msra.mxu0 %v398
    %507 = vmatprep.subr.bf16.mxu0 0
    %508 = vmatpush1.bf16.msra.mxu0 %v399
    %509 = vmatprep.subr.bf16.mxu0 0
    %510 = vmatpush1.bf16.msra.mxu0 %v400
    %511 = vmatprep.subr.bf16.mxu0 0
    %512 = vmatpush1.bf16.msra.mxu0 %v401
    %513 = vmatprep.subr.bf16.mxu0 0
    %514 = vmatpush1.bf16.msra.mxu0 %v402
    %515 = vmatprep.mubr.bf16.mxu0 %v87
    %516 = vmatmul.mubr.bf16.gmra.mrb[0].mxu0 %v86
    %v517 = vpop.f32.mrb[0].mxu0
    %v518 = vadd.f32 %v193, %v517
    %v519 = vpop.f32.mrb[0].mxu0
    %v520 = vpop.f32.mrb[0].mxu0
    %v521 = vpop.f32.mrb[0].mxu0
    %522 = vdwg.mxu0
    %523 = vmatprep.subr.bf16.mxu0 0
    %524 = vmatpush1.bf16.msra.mxu0 %v403
    %525 = vmatprep.subr.bf16.mxu0 0
    %526 = vmatpush1.bf16.msra.mxu0 %v404
    %527 = vmatprep.subr.bf16.mxu0 0
    %528 = vmatpush1.bf16.msra.mxu0 %v405
    %529 = vmatprep.subr.bf16.mxu0 0
    %530 = vmatpush1.bf16.msra.mxu0 %v406
    %531 = vmatprep.subr.bf16.mxu0 0
    %532 = vmatpush1.bf16.msra.mxu0 %v407
    %533 = vmatprep.subr.bf16.mxu0 0
    %534 = vmatpush1.bf16.msra.mxu0 %v408
    %535 = vmatprep.subr.bf16.mxu0 0
    %536 = vmatpush1.bf16.msra.mxu0 %v409
    %537 = vmatprep.subr.bf16.mxu0 0
    %538 = vmatpush1.bf16.msra.mxu0 %v410
    %539 = vmatprep.subr.bf16.mxu0 0
    %540 = vmatpush1.bf16.msra.mxu0 %v411
    %541 = vmatprep.subr.bf16.mxu0 0
    %542 = vmatpush1.bf16.msra.mxu0 %v412
    %543 = vmatprep.subr.bf16.mxu0 0
    %544 = vmatpush1.bf16.msra.mxu0 %v413
    %545 = vmatprep.subr.bf16.mxu0 0
    %546 = vmatpush1.bf16.msra.mxu0 %v414
    %547 = vmatprep.subr.bf16.mxu0 0
    %548 = vmatpush1.bf16.msra.mxu0 %v415
    %549 = vmatprep.subr.bf16.mxu0 0
    %550 = vmatpush1.bf16.msra.mxu0 %v416
    %551 = vmatprep.subr.bf16.mxu0 0
    %552 = vmatpush1.bf16.msra.mxu0 %v417
    %553 = vmatprep.subr.bf16.mxu0 0
    %554 = vmatpush1.bf16.msra.mxu0 %v418
    %555 = vmatprep.mubr.bf16.mxu0 %v89
    %556 = vmatmul.mubr.bf16.gmra.mrb[0].mxu0 %v88
    %v557 = vpop.f32.mrb[0].mxu0
    %v558 = vadd.f32 %v518, %v557
    %v559 = vpop.f32.mrb[0].mxu0
    %v560 = vpop.f32.mrb[0].mxu0
    %v561 = vpop.f32.mrb[0].mxu0
    %562 = vdwg.mxu0
    %563 = vmatprep.subr.bf16.mxu0 0
    %564 = vmatpush1.bf16.msra.mxu0 %v419
    %565 = vmatprep.subr.bf16.mxu0 0
    %566 = vmatpush1.bf16.msra.mxu0 %v420
    %567 = vmatprep.subr.bf16.mxu0 0
    %568 = vmatpush1.bf16.msra.mxu0 %v421
    %569 = vmatprep.subr.bf16.mxu0 0
    %570 = vmatpush1.bf16.msra.mxu0 %v422
    %571 = vmatprep.subr.bf16.mxu0 0
    %572 = vmatpush1.bf16.msra.mxu0 %v423
    %573 = vmatprep.subr.bf16.mxu0 0
    %574 = vmatpush1.bf16.msra.mxu0 %v424
    %575 = vmatprep.subr.bf16.mxu0 0
    %576 = vmatpush1.bf16.msra.mxu0 %v425
    %577 = vmatprep.subr.bf16.mxu0 0
    %578 = vmatpush1.bf16.msra.mxu0 %v426
    %579 = vmatprep.subr.bf16.mxu0 0
    %580 = vmatpush1.bf16.msra.mxu0 %v427
    %581 = vmatprep.subr.bf16.mxu0 0
    %582 = vmatpush1.bf16.msra.mxu0 %v428
    %583 = vmatprep.subr.bf16.mxu0 0
    %584 = vmatpush1.bf16.msra.mxu0 %v429
    %585 = vmatprep.subr.bf16.mxu0 0
    %586 = vmatpush1.bf16.msra.mxu0 %v430
    %587 = vmatprep.subr.bf16.mxu0 0
    %588 = vmatpush1.bf16.msra.mxu0 %v431
    %589 = vmatprep.subr.bf16.mxu0 0
    %590 = vmatpush1.bf16.msra.mxu0 %v432
    %591 = vmatprep.subr.bf16.mxu0 0
    %592 = vmatpush1.bf16.msra.mxu0 %v433
    %593 = vmatprep.subr.bf16.mxu0 0
    %594 = vmatpush1.bf16.msra.mxu0 %v434
    %595 = vmatprep.mubr.bf16.mxu0 %v91
    %596 = vmatmul.mubr.bf16.gmra.mrb[0].mxu0 %v90
    %v597 = vpop.f32.mrb[0].mxu0
    %v598 = vadd.f32 %v558, %v597
    %v599 = vpop.f32.mrb[0].mxu0
    %v600 = vpop.f32.mrb[0].mxu0
    %v601 = vpop.f32.mrb[0].mxu0
    %602 = vdwg.mxu0
    %v603 = vmax.f32 %v598, 0.0
    %v604 = vpack.c.bf16 %v603, %v603
    %v605 = vld [vmem:[#allocation6] sm:$0xf]
    %v606 = vld [vmem:[#allocation6 + $0x4] sm:$0xf]
    %v607 = vld [vmem:[#allocation6 + $0x8] sm:$0xf]
    %v608 = vld [vmem:[#allocation6 + $0xc] sm:$0xf]
    %v609 = vld [vmem:[#allocation6 + $0x10] sm:$0xf]
    %v610 = vld [vmem:[#allocation6 + $0x14] sm:$0xf]
    %v611 = vld [vmem:[#allocation6 + $0x18] sm:$0xf]
    %v612 = vld [vmem:[#allocation6 + $0x1c] sm:$0xf]
    %v613 = vld [vmem:[#allocation6 + $0x20] sm:$0xf]
    %v614 = vld [vmem:[#allocation6 + $0x24] sm:$0xf]
    %v615 = vld [vmem:[#allocation6 + $0x28] sm:$0xf]
    %v616 = vld [vmem:[#allocation6 + $0x2c] sm:$0xf]
    %v617 = vld [vmem:[#allocation6 + $0x30] sm:$0xf]
    %v618 = vld [vmem:[#allocation6 + $0x34] sm:$0xf]
    %v619 = vld [vmem:[#allocation6 + $0x38] sm:$0xf]
    %v620 = vld [vmem:[#allocation6 + $0x3c] sm:$0xf]
    %v621 = vld [vmem:[%s4] sm:$0x1]
    %v623 = vlaneseq
    %v624 = vshrl.u32 %v623, 7
    %v625 = vsub.s32 0, %v624
    %v626 = vrot.slane %v621, %v625
    %v644 = vunpack.c.l.b16 %v605
    %v645 = vunpack.c.l.b16 %v606
    %v646 = vunpack.c.l.b16 %v607
    %v647 = vunpack.c.l.b16 %v608
    %v648 = vunpack.c.l.b16 %v609
    %v649 = vunpack.c.l.b16 %v610
    %v650 = vunpack.c.l.b16 %v611
    %v651 = vunpack.c.l.b16 %v612
    %v652 = vunpack.c.l.b16 %v613
    %v653 = vunpack.c.l.b16 %v614
    %v654 = vunpack.c.l.b16 %v615
    %v655 = vunpack.c.l.b16 %v616
    %v656 = vunpack.c.l.b16 %v617
    %v657 = vunpack.c.l.b16 %v618
    %v658 = vunpack.c.l.b16 %v619
    %v659 = vunpack.c.l.b16 %v620
    %v660 = vpack.c.b16 %v645, %v644
    %v661 = vpack.c.b16 %v647, %v646
    %v662 = vpack.c.b16 %v649, %v648
    %v663 = vpack.c.b16 %v651, %v650
    %v664 = vpack.c.b16 %v653, %v652
    %v665 = vpack.c.b16 %v655, %v654
    %v666 = vpack.c.b16 %v657, %v656
    %v667 = vpack.c.b16 %v659, %v658
    %676 = vmatprep.subr.bf16.mxu0 0
    %677 = vmatpush1.bf16.msra.mxu0 %v660
    %678 = vmatprep.subr.bf16.mxu0 0
    %679 = vmatpush1.bf16.msra.mxu0 %v661
    %680 = vmatprep.subr.bf16.mxu0 0
    %681 = vmatpush1.bf16.msra.mxu0 %v662
    %682 = vmatprep.subr.bf16.mxu0 0
    %683 = vmatpush1.bf16.msra.mxu0 %v663
    %684 = vmatprep.subr.bf16.mxu0 0
    %685 = vmatpush1.bf16.msra.mxu0 %v664
    %686 = vmatprep.subr.bf16.mxu0 0
    %687 = vmatpush1.bf16.msra.mxu0 %v665
    %688 = vmatprep.subr.bf16.mxu0 0
    %689 = vmatpush1.bf16.msra.mxu0 %v666
    %690 = vmatprep.subr.bf16.mxu0 0
    %691 = vmatpush1.bf16.msra.mxu0 %v667
    %692 = vmatprep.subr.bf16.mxu0 0
    %693 = vmatpush1.bf16.msra.mxu0 0
    %694 = vmatprep.subr.bf16.mxu0 0
    %695 = vmatpush1.bf16.msra.mxu0 0
    %696 = vmatprep.subr.bf16.mxu0 0
    %697 = vmatpush1.bf16.msra.mxu0 0
    %698 = vmatprep.subr.bf16.mxu0 0
    %699 = vmatpush1.bf16.msra.mxu0 0
    %700 = vmatprep.subr.bf16.mxu0 0
    %701 = vmatpush1.bf16.msra.mxu0 0
    %702 = vmatprep.subr.bf16.mxu0 0
    %703 = vmatpush1.bf16.msra.mxu0 0
    %704 = vmatprep.subr.bf16.mxu0 0
    %705 = vmatpush1.bf16.msra.mxu0 0
    %706 = vmatprep.subr.bf16.mxu0 0
    %707 = vmatpush1.bf16.msra.mxu0 0
    %708 = vmatprep.mubr.bf16.mxu0 0
    %709 = vmatmul.mubr.bf16.gmra.mrb[0].mxu0 %v604
    %v710 = vpop.f32.mrb[0].mxu0
    %v711 = vadd.f32 %v626, %v710
    %v712 = vpop.f32.mrb[0].mxu0
    %v713 = vpop.f32.mrb[0].mxu0
    %v714 = vpop.f32.mrb[0].mxu0
    %715 = vdwg.mxu0
    %v716 = vmax.f32 %v711, 0.0
    %v717 = vld [vmem:[#allocation7] sm:$0xff]
    %v718 = vld [vmem:[#allocation7 + $0x8] sm:$0xff]
    %v719 = vld [vmem:[#allocation7 + $0x10] sm:$0xff]
    %v720 = vld [vmem:[#allocation7 + $0x18] sm:$0xff]
    %v721 = vld [vmem:[#allocation7 + $0x20] sm:$0xff]
    %v722 = vld [vmem:[#allocation7 + $0x28] sm:$0xff]
    %v723 = vld [vmem:[#allocation7 + $0x30] sm:$0xff]
    %v724 = vld [vmem:[#allocation7 + $0x38] sm:$0xff]
    %v725 = vld [vmem:[#allocation7 + $0x40] sm:$0xff]
    %v726 = vld [vmem:[#allocation7 + $0x48] sm:$0xff]
    %v727 = vld [vmem:[#allocation7 + $0x50] sm:$0xff]
    %v728 = vld [vmem:[#allocation7 + $0x58] sm:$0xff]
    %v729 = vld [vmem:[#allocation7 + $0x60] sm:$0xff]
    %v730 = vld [vmem:[#allocation7 + $0x68] sm:$0xff]
    %v731 = vld [vmem:[#allocation7 + $0x70] sm:$0xff]
    %v732 = vld [vmem:[#allocation7 + $0x78] sm:$0xff]
    %v733 = vld [vmem:[%s6] sm:$0x1]
    %v735 = vlaneseq
    %v736 = vshrl.u32 %v735, 7
    %v737 = vsub.s32 0, %v736
    %v738 = vrot.slane %v733, %v737
    %740 = vmatprep.subr.mxu0 0.0
    %741 = vmatpush1.msra.mxu0 %v717
    %742 = vmatprep.subr.mxu0 0.0
    %743 = vmatpush1.msra.mxu0 %v718
    %744 = vmatprep.subr.mxu0 0.0
    %745 = vmatpush1.msra.mxu0 %v719
    %746 = vmatprep.subr.mxu0 0.0
    %747 = vmatpush1.msra.mxu0 %v720
    %748 = vmatprep.subr.mxu0 0.0
    %749 = vmatpush1.msra.mxu0 %v721
    %750 = vmatprep.subr.mxu0 0.0
    %751 = vmatpush1.msra.mxu0 %v722
    %752 = vmatprep.subr.mxu0 0.0
    %753 = vmatpush1.msra.mxu0 %v723
    %754 = vmatprep.subr.mxu0 0.0
    %755 = vmatpush1.msra.mxu0 %v724
    %756 = vmatprep.subr.mxu0 0.0
    %757 = vmatpush1.msra.mxu0 %v725
    %758 = vmatprep.subr.mxu0 0.0
    %759 = vmatpush1.msra.mxu0 %v726
    %760 = vmatprep.subr.mxu0 0.0
    %761 = vmatpush1.msra.mxu0 %v727
    %762 = vmatprep.subr.mxu0 0.0
    %763 = vmatpush1.msra.mxu0 %v728
    %764 = vmatprep.subr.mxu0 0.0
    %765 = vmatpush1.msra.mxu0 %v729
    %766 = vmatprep.subr.mxu0 0.0
    %767 = vmatpush1.msra.mxu0 %v730
    %768 = vmatprep.subr.mxu0 0.0
    %769 = vmatpush1.msra.mxu0 %v731
    %770 = vmatprep.subr.mxu0 0.0
    %771 = vmatpush1.msra.mxu0 %v732
    %772 = vmatprep.subr.mxu0 0.0
    %773 = vmatpush1.msra.mxu0 0.0
    %774 = vmatprep.subr.mxu0 0.0
    %775 = vmatpush1.msra.mxu0 0.0
    %776 = vmatprep.subr.mxu0 0.0
    %777 = vmatpush1.msra.mxu0 0.0
    %778 = vmatprep.subr.mxu0 0.0
    %779 = vmatpush1.msra.mxu0 0.0
    %780 = vmatprep.subr.mxu0 0.0
    %781 = vmatpush1.msra.mxu0 0.0
    %782 = vmatprep.subr.mxu0 0.0
    %783 = vmatpush1.msra.mxu0 0.0
    %784 = vmatprep.subr.mxu0 0.0
    %785 = vmatpush1.msra.mxu0 0.0
    %786 = vmatprep.subr.mxu0 0.0
    %787 = vmatpush1.msra.mxu0 0.0
    %788 = vmatprep.subr.mxu0 0.0
    %789 = vmatpush1.msra.mxu0 0.0
    %790 = vmatprep.subr.mxu0 0.0
    %791 = vmatpush1.msra.mxu0 0.0
    %792 = vmatprep.subr.mxu0 0.0
    %793 = vmatpush1.msra.mxu0 0.0
    %794 = vmatprep.subr.mxu0 0.0
    %795 = vmatpush1.msra.mxu0 0.0
    %796 = vmatprep.subr.mxu0 0.0
    %797 = vmatpush1.msra.mxu0 0.0
    %798 = vmatprep.subr.mxu0 0.0
    %799 = vmatpush1.msra.mxu0 0.0
    %800 = vmatprep.subr.mxu0 0.0
    %801 = vmatpush1.msra.mxu0 0.0
    %802 = vmatprep.subr.mxu0 0.0
    %803 = vmatpush1.msra.mxu0 0.0
    %804 = vmatprep.mubr.f32.mxu0 0.0
    %805 = vmatmul.mubr.f32.gmra.mrb[0].mxu0 %v716
    %v806 = vpop.f32.mrb[0].mxu0
    %v807 = vadd.f32 %v738, %v806
    %v808 = vpop.f32.mrb[0].mxu0
    %809 = vdwg.mxu0
    %vm810 = vcmask 15360
    %811 = vst.msk [vmem:[%s7] sm:$0xff] %vm810, %v807
    // Predicated region
    $region46: #{classifier_head.1} parent=1 // pred_check
      _
    $region47: #{classifier_head.1} parent=1 // pred_check_branch
      %813 = sbr.rel (0) target = $region49
    $region48: #{classifier_head.1} parent=1 // pred_region
      _
    $region49: #{classifier_head.1} parent=1 // pred_fallthru
      _
    // Predicated region
    $region50: #{classifier_head.1} parent=1 // pred_check
      _
    $region51: #{classifier_head.1} parent=1 // pred_check_branch
      %815 = sbr.rel (0) target = $region53
    $region52: #{classifier_head.1} parent=1 // pred_region
      _
    $region53: #{classifier_head.1} parent=1 // pred_fallthru
      _
    %816 = vsyncpa [#allocation3], 1
    %817 = vsyncpa [#allocation5], 1
    %818 = vsyncpa [#allocation8], 1

</llo_original>
